<compile_context>
chip_gen: v7x
topology: tpu7x:2x2x1
jax: 0.10.0
libtpu: 0.0.40
codegen_flags: <defaults>
</compile_context>

<pallas_src>
import functools

import jax
import jax.numpy as jnp
from jax import lax
from jax.experimental import pallas as pl
from jax.experimental.pallas import tpu as pltpu


def _relation_loss_kernel(xt_ref, o_ref, flat_ref, col_ref, *, k):
    """One grid step == one batch element.  xt_ref holds [X; T] stacked."""
    n = xt_ref.shape[1] // 2
    m = n * n

    # ---- fused Gram matmul: one MXU call covers input AND target -----------
    xt = xt_ref[0]                                                 # (2N, D)
    gram = lax.dot_general(
        xt, xt, (((1,), (1,)), ((), ())),                          # XT @ XT^T
        preferred_element_type=jnp.float32,
        precision=lax.Precision.HIGHEST)                           # (2N, 2N)
    sims = (gram[:n, :n], gram[n:, n:])                            # input, target

    # ---- flatten each similarity into lane-dense / sublane-dense copies ----
    # flat_ref[b]   : (1, M) row-major flat view (lanes)    -> keep/diff/sum
    # col_ref[:, b] : (M, 1) column-major flat view (sublanes) -> rank count
    # (column-major order is fine: the rank count below is order-agnostic.)
    for b, sim in enumerate(sims):
        for p in range(n):
            flat_ref[b:b + 1, p * n:(p + 1) * n] = sim[p:p + 1, :]
            col_ref[p * n:(p + 1) * n, b:b + 1] = sim[:, p:p + 1]

    # ---- exact top-k threshold (vectorized): keep x <=> #{y > x} < k --------
    # Identical to torch.where(S < topk(S.view(-1), k)[0][-1], 0, S), including
    # tie handling.  Counts are exact in f32 since M << 2^24 (use int32 if
    # N*N ever approaches that scale).
    kf = jnp.float32(k)
    kept = []
    for b in range(2):
        row = flat_ref[b:b + 1, :]                        # (1, M) lane-dense
        col = col_ref[:, b:b + 1]                         # (M, 1) sublane-dense
        greater = (col > row).astype(jnp.float32)         # (M, M) pairwise ">"
        rank = jnp.sum(greater, axis=0, keepdims=True)    # (1, M)
        kept.append(jnp.where(rank < kf, row, jnp.zeros_like(row)))

    diff = kept[0] - kept[1]                                             # (1, M)
    loss = jnp.sum(diff * diff, axis=1, keepdims=True) / jnp.float32(m)  # (1, 1)
    # Lane-dense output block (unmasked store); wrapper reads element [0, 0].
    o_ref[0] = jnp.broadcast_to(loss, o_ref.shape[1:])


def relation_loss(_input, _target, indices, percentage):
    b = len(indices)                       # module only uses len(indices)
    x = jnp.asarray(_input, jnp.float32)[:b]
    t = jnp.asarray(_target, jnp.float32)[:b]
    _, n, d = x.shape
    m = n * n
    k = int(m * percentage)
    assert k >= 1, "percentage too small: k-th largest value undefined"

    xt = jnp.concatenate([x, t], axis=1)   # (B, 2N, D): [X_b; T_b] per batch

    kernel = functools.partial(_relation_loss_kernel, k=k)
    out = pl.pallas_call(
        kernel,
        grid=(b,),
        in_specs=[pl.BlockSpec((1, 2 * n, d), lambda i: (i, 0, 0))],
        out_specs=pl.BlockSpec((1, 8, 128), lambda i: (i, 0, 0)),
        out_shape=jax.ShapeDtypeStruct((b, 8, 128), jnp.float32),
        scratch_shapes=[pltpu.VMEM((2, m), jnp.float32),   # lane-dense flats
                        pltpu.VMEM((m, 2), jnp.float32)],  # sublane-dense flats
        compiler_params=pltpu.CompilerParams(
            dimension_semantics=("parallel",)),            # megacore on v7x
    )(xt)
    return jnp.mean(out[:, 0, 0])


def relation_loss_reference(x, t, indices, percentage):
    """Pure-JAX reference mirroring the PyTorch forward (sort-based topk)."""
    b = len(indices)
    losses = []
    for i in range(b):
        def thr(s):
            m = s.size
            k = int(m * percentage)
            v = jnp.sort(s.reshape(-1))[::-1][k - 1]
            return jnp.where(s < v, jnp.zeros_like(s), s)
        si = thr(jnp.einsum("nd,md->nm", x[i], x[i], precision="highest"))
        st = thr(jnp.einsum("nd,md->nm", t[i], t[i], precision="highest"))
        losses.append(jnp.mean(jnp.square(si - st)))
    return jnp.mean(jnp.stack(losses))


if __name__ == "__main__":
    B, N, D = 2, 8, 32
    percentage = 0.25

    key = jax.random.PRNGKey(0)
    kx, kt = jax.random.split(key)
    x = jax.random.normal(kx, (B, N, D), dtype=jnp.float32)
    t = jax.random.normal(kt, (B, N, D), dtype=jnp.float32)
    indices = list(range(B))

    loss = relation_loss(x, t, indices, percentage)
    loss = jax.block_until_ready(loss)

    ref = relation_loss_reference(x, t, indices, percentage)
    assert bool(jnp.isfinite(loss)), loss
    assert jnp.allclose(loss, ref, rtol=5e-3, atol=5e-3), (loss, ref)
    print("KERNEL_OK")
</pallas_src>

<mosaic_0001>
module attributes {stable_mosaic.version = 11 : i64} {
  func.func @_relation_loss_kernel(%arg0: i32, %arg1: memref<1x16x32xf32, #tpu.memory_space<vmem>>, %arg2: memref<1x8x128xf32, #tpu.memory_space<vmem>>, %arg3: memref<2x64xf32, #tpu.memory_space<vmem>>, %arg4: memref<64x2xf32, #tpu.memory_space<vmem>>) attributes {dimension_semantics = [#tpu.dimension_semantics<parallel>], iteration_bounds = array<i64: 2>, scalar_prefetch = 0 : i64, scratch_operands = 2 : i64, tpu.core_type = #tpu.core_type<tc>, window_params = [{transform_indices = @transform_0, window_bounds = array<i64: 1, 16, 32>}, {transform_indices = @transform_1, window_bounds = array<i64: 1, 8, 128>}]} {
    %c0 = arith.constant 0 : index
    %c0_0 = arith.constant 0 : index
    %c0_1 = arith.constant 0 : index
    %0 = vector.load %arg1[%c0, %c0_0, %c0_1] : memref<1x16x32xf32, #tpu.memory_space<vmem>>, vector<1x16x32xf32>
    %1 = vector.shape_cast %0 : vector<1x16x32xf32> to vector<16x32xf32>
    %cst = arith.constant dense<0.000000e+00> : vector<16x16xf32>
    %2 = tpu.matmul %1, %1, %cst {dimension_numbers = #tpu.dot_dimension_numbers<[1], [1], [0], [0], [0, 0, 1, 0], [], []>, precision = #tpu.contract_precision<fp32>} : vector<16x32xf32>, vector<16x32xf32>, vector<16x16xf32> -> vector<16x16xf32>
    %3 = vector.extract_strided_slice %2 {offsets = [0, 0], sizes = [8, 8], strides = [1, 1]} : vector<16x16xf32> to vector<8x8xf32>
    %4 = vector.extract_strided_slice %2 {offsets = [8, 8], sizes = [8, 8], strides = [1, 1]} : vector<16x16xf32> to vector<8x8xf32>
    %5 = vector.extract_strided_slice %3 {offsets = [0, 0], sizes = [1, 8], strides = [1, 1]} : vector<8x8xf32> to vector<1x8xf32>
    %c0_2 = arith.constant 0 : index
    %c0_3 = arith.constant 0 : index
    %6 = vector.load %arg3[%c0_2, %c0_3] : memref<2x64xf32, #tpu.memory_space<vmem>>, vector<1x8xf32>
    tpu.vector_store %arg3[%c0_2, %c0_3], %5 {strides = array<i32>} : memref<2x64xf32, #tpu.memory_space<vmem>>, vector<1x8xf32>,
    %7 = vector.extract_strided_slice %3 {offsets = [0, 0], sizes = [8, 1], strides = [1, 1]} : vector<8x8xf32> to vector<8x1xf32>
    %c0_4 = arith.constant 0 : index
    %c0_5 = arith.constant 0 : index
    %8 = vector.load %arg4[%c0_4, %c0_5] : memref<64x2xf32, #tpu.memory_space<vmem>>, vector<8x1xf32>
    tpu.vector_store %arg4[%c0_4, %c0_5], %7 {strides = array<i32>} : memref<64x2xf32, #tpu.memory_space<vmem>>, vector<8x1xf32>,
    %9 = vector.extract_strided_slice %3 {offsets = [1, 0], sizes = [1, 8], strides = [1, 1]} : vector<8x8xf32> to vector<1x8xf32>
    %c0_6 = arith.constant 0 : index
    %c8 = arith.constant 8 : index
    %10 = vector.load %arg3[%c0_6, %c8] : memref<2x64xf32, #tpu.memory_space<vmem>>, vector<1x8xf32>
    tpu.vector_store %arg3[%c0_6, %c8], %9 {strides = array<i32>} : memref<2x64xf32, #tpu.memory_space<vmem>>, vector<1x8xf32>,
    %11 = vector.extract_strided_slice %3 {offsets = [0, 1], sizes = [8, 1], strides = [1, 1]} : vector<8x8xf32> to vector<8x1xf32>
    %c8_7 = arith.constant 8 : index
    %c0_8 = arith.constant 0 : index
    %12 = vector.load %arg4[%c8_7, %c0_8] : memref<64x2xf32, #tpu.memory_space<vmem>>, vector<8x1xf32>
    tpu.vector_store %arg4[%c8_7, %c0_8], %11 {strides = array<i32>} : memref<64x2xf32, #tpu.memory_space<vmem>>, vector<8x1xf32>,
    %13 = vector.extract_strided_slice %3 {offsets = [2, 0], sizes = [1, 8], strides = [1, 1]} : vector<8x8xf32> to vector<1x8xf32>
    %c0_9 = arith.constant 0 : index
    %c16 = arith.constant 16 : index
    %14 = vector.load %arg3[%c0_9, %c16] : memref<2x64xf32, #tpu.memory_space<vmem>>, vector<1x8xf32>
    tpu.vector_store %arg3[%c0_9, %c16], %13 {strides = array<i32>} : memref<2x64xf32, #tpu.memory_space<vmem>>, vector<1x8xf32>,
    %15 = vector.extract_strided_slice %3 {offsets = [0, 2], sizes = [8, 1], strides = [1, 1]} : vector<8x8xf32> to vector<8x1xf32>
    %c16_10 = arith.constant 16 : index
    %c0_11 = arith.constant 0 : index
    %16 = vector.load %arg4[%c16_10, %c0_11] : memref<64x2xf32, #tpu.memory_space<vmem>>, vector<8x1xf32>
    tpu.vector_store %arg4[%c16_10, %c0_11], %15 {strides = array<i32>} : memref<64x2xf32, #tpu.memory_space<vmem>>, vector<8x1xf32>,
    %17 = vector.extract_strided_slice %3 {offsets = [3, 0], sizes = [1, 8], strides = [1, 1]} : vector<8x8xf32> to vector<1x8xf32>
    %c0_12 = arith.constant 0 : index
    %c24 = arith.constant 24 : index
    %18 = vector.load %arg3[%c0_12, %c24] : memref<2x64xf32, #tpu.memory_space<vmem>>, vector<1x8xf32>
    tpu.vector_store %arg3[%c0_12, %c24], %17 {strides = array<i32>} : memref<2x64xf32, #tpu.memory_space<vmem>>, vector<1x8xf32>,
    %19 = vector.extract_strided_slice %3 {offsets = [0, 3], sizes = [8, 1], strides = [1, 1]} : vector<8x8xf32> to vector<8x1xf32>
    %c24_13 = arith.constant 24 : index
    %c0_14 = arith.constant 0 : index
    %20 = vector.load %arg4[%c24_13, %c0_14] : memref<64x2xf32, #tpu.memory_space<vmem>>, vector<8x1xf32>
    tpu.vector_store %arg4[%c24_13, %c0_14], %19 {strides = array<i32>} : memref<64x2xf32, #tpu.memory_space<vmem>>, vector<8x1xf32>,
    %21 = vector.extract_strided_slice %3 {offsets = [4, 0], sizes = [1, 8], strides = [1, 1]} : vector<8x8xf32> to vector<1x8xf32>
    %c0_15 = arith.constant 0 : index
    %c32 = arith.constant 32 : index
    %22 = vector.load %arg3[%c0_15, %c32] : memref<2x64xf32, #tpu.memory_space<vmem>>, vector<1x8xf32>
    tpu.vector_store %arg3[%c0_15, %c32], %21 {strides = array<i32>} : memref<2x64xf32, #tpu.memory_space<vmem>>, vector<1x8xf32>,
    %23 = vector.extract_strided_slice %3 {offsets = [0, 4], sizes = [8, 1], strides = [1, 1]} : vector<8x8xf32> to vector<8x1xf32>
    %c32_16 = arith.constant 32 : index
    %c0_17 = arith.constant 0 : index
    %24 = vector.load %arg4[%c32_16, %c0_17] : memref<64x2xf32, #tpu.memory_space<vmem>>, vector<8x1xf32>
    tpu.vector_store %arg4[%c32_16, %c0_17], %23 {strides = array<i32>} : memref<64x2xf32, #tpu.memory_space<vmem>>, vector<8x1xf32>,
    %25 = vector.extract_strided_slice %3 {offsets = [5, 0], sizes = [1, 8], strides = [1, 1]} : vector<8x8xf32> to vector<1x8xf32>
    %c0_18 = arith.constant 0 : index
    %c40 = arith.constant 40 : index
    %26 = vector.load %arg3[%c0_18, %c40] : memref<2x64xf32, #tpu.memory_space<vmem>>, vector<1x8xf32>
    tpu.vector_store %arg3[%c0_18, %c40], %25 {strides = array<i32>} : memref<2x64xf32, #tpu.memory_space<vmem>>, vector<1x8xf32>,
    %27 = vector.extract_strided_slice %3 {offsets = [0, 5], sizes = [8, 1], strides = [1, 1]} : vector<8x8xf32> to vector<8x1xf32>
    %c40_19 = arith.constant 40 : index
    %c0_20 = arith.constant 0 : index
    %28 = vector.load %arg4[%c40_19, %c0_20] : memref<64x2xf32, #tpu.memory_space<vmem>>, vector<8x1xf32>
    tpu.vector_store %arg4[%c40_19, %c0_20], %27 {strides = array<i32>} : memref<64x2xf32, #tpu.memory_space<vmem>>, vector<8x1xf32>,
    %29 = vector.extract_strided_slice %3 {offsets = [6, 0], sizes = [1, 8], strides = [1, 1]} : vector<8x8xf32> to vector<1x8xf32>
    %c0_21 = arith.constant 0 : index
    %c48 = arith.constant 48 : index
    %30 = vector.load %arg3[%c0_21, %c48] : memref<2x64xf32, #tpu.memory_space<vmem>>, vector<1x8xf32>
    tpu.vector_store %arg3[%c0_21, %c48], %29 {strides = array<i32>} : memref<2x64xf32, #tpu.memory_space<vmem>>, vector<1x8xf32>,
    %31 = vector.extract_strided_slice %3 {offsets = [0, 6], sizes = [8, 1], strides = [1, 1]} : vector<8x8xf32> to vector<8x1xf32>
    %c48_22 = arith.constant 48 : index
    %c0_23 = arith.constant 0 : index
    %32 = vector.load %arg4[%c48_22, %c0_23] : memref<64x2xf32, #tpu.memory_space<vmem>>, vector<8x1xf32>
    tpu.vector_store %arg4[%c48_22, %c0_23], %31 {strides = array<i32>} : memref<64x2xf32, #tpu.memory_space<vmem>>, vector<8x1xf32>,
    %33 = vector.extract_strided_slice %3 {offsets = [7, 0], sizes = [1, 8], strides = [1, 1]} : vector<8x8xf32> to vector<1x8xf32>
    %c0_24 = arith.constant 0 : index
    %c56 = arith.constant 56 : index
    %34 = vector.load %arg3[%c0_24, %c56] : memref<2x64xf32, #tpu.memory_space<vmem>>, vector<1x8xf32>
    tpu.vector_store %arg3[%c0_24, %c56], %33 {strides = array<i32>} : memref<2x64xf32, #tpu.memory_space<vmem>>, vector<1x8xf32>,
    %35 = vector.extract_strided_slice %3 {offsets = [0, 7], sizes = [8, 1], strides = [1, 1]} : vector<8x8xf32> to vector<8x1xf32>
    %c56_25 = arith.constant 56 : index
    %c0_26 = arith.constant 0 : index
    %36 = vector.load %arg4[%c56_25, %c0_26] : memref<64x2xf32, #tpu.memory_space<vmem>>, vector<8x1xf32>
    tpu.vector_store %arg4[%c56_25, %c0_26], %35 {strides = array<i32>} : memref<64x2xf32, #tpu.memory_space<vmem>>, vector<8x1xf32>,
    %37 = vector.extract_strided_slice %4 {offsets = [0, 0], sizes = [1, 8], strides = [1, 1]} : vector<8x8xf32> to vector<1x8xf32>
    %c1 = arith.constant 1 : index
    %c0_27 = arith.constant 0 : index
    %38 = vector.load %arg3[%c1, %c0_27] : memref<2x64xf32, #tpu.memory_space<vmem>>, vector<1x8xf32>
    tpu.vector_store %arg3[%c1, %c0_27], %37 {strides = array<i32>} : memref<2x64xf32, #tpu.memory_space<vmem>>, vector<1x8xf32>,
    %39 = vector.extract_strided_slice %4 {offsets = [0, 0], sizes = [8, 1], strides = [1, 1]} : vector<8x8xf32> to vector<8x1xf32>
    %c0_28 = arith.constant 0 : index
    %c1_29 = arith.constant 1 : index
    %40 = vector.load %arg4[%c0_28, %c1_29] : memref<64x2xf32, #tpu.memory_space<vmem>>, vector<8x1xf32>
    tpu.vector_store %arg4[%c0_28, %c1_29], %39 {strides = array<i32>} : memref<64x2xf32, #tpu.memory_space<vmem>>, vector<8x1xf32>,
    %41 = vector.extract_strided_slice %4 {offsets = [1, 0], sizes = [1, 8], strides = [1, 1]} : vector<8x8xf32> to vector<1x8xf32>
    %c1_30 = arith.constant 1 : index
    %c8_31 = arith.constant 8 : index
    %42 = vector.load %arg3[%c1_30, %c8_31] : memref<2x64xf32, #tpu.memory_space<vmem>>, vector<1x8xf32>
    tpu.vector_store %arg3[%c1_30, %c8_31], %41 {strides = array<i32>} : memref<2x64xf32, #tpu.memory_space<vmem>>, vector<1x8xf32>,
    %43 = vector.extract_strided_slice %4 {offsets = [0, 1], sizes = [8, 1], strides = [1, 1]} : vector<8x8xf32> to vector<8x1xf32>
    %c8_32 = arith.constant 8 : index
    %c1_33 = arith.constant 1 : index
    %44 = vector.load %arg4[%c8_32, %c1_33] : memref<64x2xf32, #tpu.memory_space<vmem>>, vector<8x1xf32>
    tpu.vector_store %arg4[%c8_32, %c1_33], %43 {strides = array<i32>} : memref<64x2xf32, #tpu.memory_space<vmem>>, vector<8x1xf32>,
    %45 = vector.extract_strided_slice %4 {offsets = [2, 0], sizes = [1, 8], strides = [1, 1]} : vector<8x8xf32> to vector<1x8xf32>
    %c1_34 = arith.constant 1 : index
    %c16_35 = arith.constant 16 : index
    %46 = vector.load %arg3[%c1_34, %c16_35] : memref<2x64xf32, #tpu.memory_space<vmem>>, vector<1x8xf32>
    tpu.vector_store %arg3[%c1_34, %c16_35], %45 {strides = array<i32>} : memref<2x64xf32, #tpu.memory_space<vmem>>, vector<1x8xf32>,
    %47 = vector.extract_strided_slice %4 {offsets = [0, 2], sizes = [8, 1], strides = [1, 1]} : vector<8x8xf32> to vector<8x1xf32>
    %c16_36 = arith.constant 16 : index
    %c1_37 = arith.constant 1 : index
    %48 = vector.load %arg4[%c16_36, %c1_37] : memref<64x2xf32, #tpu.memory_space<vmem>>, vector<8x1xf32>
    tpu.vector_store %arg4[%c16_36, %c1_37], %47 {strides = array<i32>} : memref<64x2xf32, #tpu.memory_space<vmem>>, vector<8x1xf32>,
    %49 = vector.extract_strided_slice %4 {offsets = [3, 0], sizes = [1, 8], strides = [1, 1]} : vector<8x8xf32> to vector<1x8xf32>
    %c1_38 = arith.constant 1 : index
    %c24_39 = arith.constant 24 : index
    %50 = vector.load %arg3[%c1_38, %c24_39] : memref<2x64xf32, #tpu.memory_space<vmem>>, vector<1x8xf32>
    tpu.vector_store %arg3[%c1_38, %c24_39], %49 {strides = array<i32>} : memref<2x64xf32, #tpu.memory_space<vmem>>, vector<1x8xf32>,
    %51 = vector.extract_strided_slice %4 {offsets = [0, 3], sizes = [8, 1], strides = [1, 1]} : vector<8x8xf32> to vector<8x1xf32>
    %c24_40 = arith.constant 24 : index
    %c1_41 = arith.constant 1 : index
    %52 = vector.load %arg4[%c24_40, %c1_41] : memref<64x2xf32, #tpu.memory_space<vmem>>, vector<8x1xf32>
    tpu.vector_store %arg4[%c24_40, %c1_41], %51 {strides = array<i32>} : memref<64x2xf32, #tpu.memory_space<vmem>>, vector<8x1xf32>,
    %53 = vector.extract_strided_slice %4 {offsets = [4, 0], sizes = [1, 8], strides = [1, 1]} : vector<8x8xf32> to vector<1x8xf32>
    %c1_42 = arith.constant 1 : index
    %c32_43 = arith.constant 32 : index
    %54 = vector.load %arg3[%c1_42, %c32_43] : memref<2x64xf32, #tpu.memory_space<vmem>>, vector<1x8xf32>
    tpu.vector_store %arg3[%c1_42, %c32_43], %53 {strides = array<i32>} : memref<2x64xf32, #tpu.memory_space<vmem>>, vector<1x8xf32>,
    %55 = vector.extract_strided_slice %4 {offsets = [0, 4], sizes = [8, 1], strides = [1, 1]} : vector<8x8xf32> to vector<8x1xf32>
    %c32_44 = arith.constant 32 : index
    %c1_45 = arith.constant 1 : index
    %56 = vector.load %arg4[%c32_44, %c1_45] : memref<64x2xf32, #tpu.memory_space<vmem>>, vector<8x1xf32>
    tpu.vector_store %arg4[%c32_44, %c1_45], %55 {strides = array<i32>} : memref<64x2xf32, #tpu.memory_space<vmem>>, vector<8x1xf32>,
    %57 = vector.extract_strided_slice %4 {offsets = [5, 0], sizes = [1, 8], strides = [1, 1]} : vector<8x8xf32> to vector<1x8xf32>
    %c1_46 = arith.constant 1 : index
    %c40_47 = arith.constant 40 : index
    %58 = vector.load %arg3[%c1_46, %c40_47] : memref<2x64xf32, #tpu.memory_space<vmem>>, vector<1x8xf32>
    tpu.vector_store %arg3[%c1_46, %c40_47], %57 {strides = array<i32>} : memref<2x64xf32, #tpu.memory_space<vmem>>, vector<1x8xf32>,
    %59 = vector.extract_strided_slice %4 {offsets = [0, 5], sizes = [8, 1], strides = [1, 1]} : vector<8x8xf32> to vector<8x1xf32>
    %c40_48 = arith.constant 40 : index
    %c1_49 = arith.constant 1 : index
    %60 = vector.load %arg4[%c40_48, %c1_49] : memref<64x2xf32, #tpu.memory_space<vmem>>, vector<8x1xf32>
    tpu.vector_store %arg4[%c40_48, %c1_49], %59 {strides = array<i32>} : memref<64x2xf32, #tpu.memory_space<vmem>>, vector<8x1xf32>,
    %61 = vector.extract_strided_slice %4 {offsets = [6, 0], sizes = [1, 8], strides = [1, 1]} : vector<8x8xf32> to vector<1x8xf32>
    %c1_50 = arith.constant 1 : index
    %c48_51 = arith.constant 48 : index
    %62 = vector.load %arg3[%c1_50, %c48_51] : memref<2x64xf32, #tpu.memory_space<vmem>>, vector<1x8xf32>
    tpu.vector_store %arg3[%c1_50, %c48_51], %61 {strides = array<i32>} : memref<2x64xf32, #tpu.memory_space<vmem>>, vector<1x8xf32>,
    %63 = vector.extract_strided_slice %4 {offsets = [0, 6], sizes = [8, 1], strides = [1, 1]} : vector<8x8xf32> to vector<8x1xf32>
    %c48_52 = arith.constant 48 : index
    %c1_53 = arith.constant 1 : index
    %64 = vector.load %arg4[%c48_52, %c1_53] : memref<64x2xf32, #tpu.memory_space<vmem>>, vector<8x1xf32>
    tpu.vector_store %arg4[%c48_52, %c1_53], %63 {strides = array<i32>} : memref<64x2xf32, #tpu.memory_space<vmem>>, vector<8x1xf32>,
    %65 = vector.extract_strided_slice %4 {offsets = [7, 0], sizes = [1, 8], strides = [1, 1]} : vector<8x8xf32> to vector<1x8xf32>
    %c1_54 = arith.constant 1 : index
    %c56_55 = arith.constant 56 : index
    %66 = vector.load %arg3[%c1_54, %c56_55] : memref<2x64xf32, #tpu.memory_space<vmem>>, vector<1x8xf32>
    tpu.vector_store %arg3[%c1_54, %c56_55], %65 {strides = array<i32>} : memref<2x64xf32, #tpu.memory_space<vmem>>, vector<1x8xf32>,
    %67 = vector.extract_strided_slice %4 {offsets = [0, 7], sizes = [8, 1], strides = [1, 1]} : vector<8x8xf32> to vector<8x1xf32>
    %c56_56 = arith.constant 56 : index
    %c1_57 = arith.constant 1 : index
    %68 = vector.load %arg4[%c56_56, %c1_57] : memref<64x2xf32, #tpu.memory_space<vmem>>, vector<8x1xf32>
    tpu.vector_store %arg4[%c56_56, %c1_57], %67 {strides = array<i32>} : memref<64x2xf32, #tpu.memory_space<vmem>>, vector<8x1xf32>,
    %c0_58 = arith.constant 0 : index
    %c0_59 = arith.constant 0 : index
    %69 = vector.load %arg3[%c0_58, %c0_59] : memref<2x64xf32, #tpu.memory_space<vmem>>, vector<1x64xf32>
    %c0_60 = arith.constant 0 : index
    %c0_61 = arith.constant 0 : index
    %70 = vector.load %arg4[%c0_60, %c0_61] : memref<64x2xf32, #tpu.memory_space<vmem>>, vector<64x1xf32>
    %71 = vector.broadcast %70 : vector<64x1xf32> to vector<64x64xf32>
    %72 = vector.broadcast %69 : vector<1x64xf32> to vector<64x64xf32>
    %73 = arith.cmpf ogt, %71, %72 : vector<64x64xf32>
    %74 = arith.extui %73 : vector<64x64xi1> to vector<64x64xi32>
    %75 = arith.sitofp %74 : vector<64x64xi32> to vector<64x64xf32>
    %cst_62 = arith.constant dense<0.000000e+00> : vector<64xf32>
    %76 = vector.multi_reduction <add>, %75, %cst_62 [0] : vector<64x64xf32> to vector<64xf32>
    %77 = vector.shape_cast %76 : vector<64xf32> to vector<1x64xf32>
    %cst_63 = arith.constant 1.600000e+01 : f32
    %78 = vector.broadcast %cst_63 : f32 to vector<1x64xf32>
    %79 = arith.cmpf olt, %77, %78 : vector<1x64xf32>
    %cst_64 = arith.constant 0.000000e+00 : f32
    %80 = vector.broadcast %cst_64 : f32 to vector<1x64xf32>
    %81 = arith.select %79, %69, %80 : vector<1x64xi1>, vector<1x64xf32>
    %c1_65 = arith.constant 1 : index
    %c0_66 = arith.constant 0 : index
    %82 = vector.load %arg3[%c1_65, %c0_66] : memref<2x64xf32, #tpu.memory_space<vmem>>, vector<1x64xf32>
    %c0_67 = arith.constant 0 : index
    %c1_68 = arith.constant 1 : index
    %83 = vector.load %arg4[%c0_67, %c1_68] : memref<64x2xf32, #tpu.memory_space<vmem>>, vector<64x1xf32>
    %84 = vector.broadcast %83 : vector<64x1xf32> to vector<64x64xf32>
    %85 = vector.broadcast %82 : vector<1x64xf32> to vector<64x64xf32>
    %86 = arith.cmpf ogt, %84, %85 : vector<64x64xf32>
    %87 = arith.extui %86 : vector<64x64xi1> to vector<64x64xi32>
    %88 = arith.sitofp %87 : vector<64x64xi32> to vector<64x64xf32>
    %cst_69 = arith.constant dense<0.000000e+00> : vector<64xf32>
    %89 = vector.multi_reduction <add>, %88, %cst_69 [0] : vector<64x64xf32> to vector<64xf32>
    %90 = vector.shape_cast %89 : vector<64xf32> to vector<1x64xf32>
    %cst_70 = arith.constant 1.600000e+01 : f32
    %91 = vector.broadcast %cst_70 : f32 to vector<1x64xf32>
    %92 = arith.cmpf olt, %90, %91 : vector<1x64xf32>
    %cst_71 = arith.constant 0.000000e+00 : f32
    %93 = vector.broadcast %cst_71 : f32 to vector<1x64xf32>
    %94 = arith.select %92, %82, %93 : vector<1x64xi1>, vector<1x64xf32>
    %95 = arith.subf %81, %94 : vector<1x64xf32>
    %96 = arith.mulf %95, %95 : vector<1x64xf32>
    %cst_72 = arith.constant dense<0.000000e+00> : vector<1xf32>
    %97 = vector.multi_reduction <add>, %96, %cst_72 [1] : vector<1x64xf32> to vector<1xf32>
    %98 = vector.shape_cast %97 : vector<1xf32> to vector<1x1xf32>
    %cst_73 = arith.constant 6.400000e+01 : f32
    %99 = vector.broadcast %cst_73 : f32 to vector<1x1xf32>
    %100 = arith.divf %98, %99 : vector<1x1xf32>
    %101 = vector.shape_cast %100 : vector<1x1xf32> to vector<1x1xf32>
    %102 = vector.broadcast %101 : vector<1x1xf32> to vector<8x128xf32>
    %c0_74 = arith.constant 0 : index
    %c0_75 = arith.constant 0 : index
    %c0_76 = arith.constant 0 : index
    %103 = vector.load %arg2[%c0_74, %c0_75, %c0_76] : memref<1x8x128xf32, #tpu.memory_space<vmem>>, vector<1x8x128xf32>
    %104 = vector.shape_cast %103 : vector<1x8x128xf32> to vector<8x128xf32>
    %105 = vector.shape_cast %102 : vector<8x128xf32> to vector<1x8x128xf32>
    tpu.vector_store %arg2[%c0_74, %c0_75, %c0_76], %105 {strides = array<i32>} : memref<1x8x128xf32, #tpu.memory_space<vmem>>, vector<1x8x128xf32>,
    return
  }
  func.func @transform_0(%arg0: i32) -> (i32, i32, i32) {
    %c0_i32 = arith.constant 0 : i32
    %c0_i32_0 = arith.constant 0 : i32
    %c0_i32_1 = arith.constant 0 : i32
    return %arg0, %c0_i32, %c0_i32_0 : i32, i32, i32
  }
  func.func @transform_1(%arg0: i32) -> (i32, i32, i32) {
    %c0_i32 = arith.constant 0 : i32
    %c0_i32_0 = arith.constant 0 : i32
    %c0_i32_1 = arith.constant 0 : i32
    return %arg0, %c0_i32, %c0_i32_0 : i32, i32, i32
  }
}

</mosaic_0001>

<llo_original>
// kernel: tpu_custom_call.1
$region0: #{tpu_custom_call.1}
  #allocation0 [shape = 'u32[]', space=smem, size = 0x4, offset = 0x4, fixed_abs, tag = 'smem constant byte address 0x4 - core index']
  #allocation1 [shape = 'u32[144,128]{1,0:T(1,128)}', space=vmem, size = 0x12000, scoped, tag = 'internal scratch']
  #allocation2 [shape = 'f32[2,64]{1,0:T(2,128)}', space=vmem, size = 0x400, scoped, tag = 'scratch operand']
  #allocation3 [shape = 'f32[64,2]{1,0:T(8,128)}', space=vmem, size = 0x8000, scoped, tag = 'scratch operand']
  %s0 = inlined_call_operand.hbm [shape: f32[2,16,32], index: 0, kind: input, shape index: {}]
  %s1 = inlined_call_operand.hbm [shape: f32[2,8,128], index: 1, kind: output, shape index: {}]
  %s2 = sld [smem:[#allocation0]]
  $region41: #{tpu_custom_call.1} parent=0
    _
  %s4 = ssub.s32 1, %s2
  %s5 = scalar_select 0, %s4, %s2
  $region1: #{tpu_custom_call.1} parent=0
    #allocation4 [shape = 'u8[16384]{0}', space=vmem, size = 0x4000, scoped, tag = 'input window, operand 0']
    #allocation5 [shape = 's32[2]{0}', space=sflag, size = 0x8, scoped, tag = 'scoped memory for tpu_custom_call.1']
    #allocation6 [shape = 's32[2]{0}', space=sflag, size = 0x8, scoped, tag = 'scoped memory for tpu_custom_call.1']
    #allocation7 [shape = 'u8[8192]{0}', space=vmem, size = 0x2000, scoped, tag = 'output window, operand 0']
    %6 = vsyncpa [#allocation5], 0
    %s7 = scalar_lea.sflag [#allocation5], 1
    %8 = vsyncpa %s7, 0
    %9 = vsyncpa [#allocation6], 0
    %s10 = scalar_lea.sflag [#allocation6], 1
    %11 = vsyncpa %s10, 0
    loop: start=0, step=1, limit=4
    $region2: #{tpu_custom_call.1} parent=1 // loop_pre_header
      _
    $region3: #{tpu_custom_call.1} parent=1 // loop_header
      %s13 = sphi 0, %s17
      %p14 = scmp.ge.s32.totalorder %s13, 4
      %s23 = sphi 0, %s25
      %s26 = sphi 0, %s23
      %s27 = sphi 0, %s26
      %s43 = sphi 0, %s27
      %s49 = sphi 0, %s51
      %s52 = sphi 0, %s49
      %s53 = sphi 0, %s52
      %s69 = sphi 0, %s53
    $region4: #{tpu_custom_call.1} parent=1 // loop_header_branch
      %16 = sbr.rel (%p14) target = $region8
    $region5: #{tpu_custom_call.1} parent=1 // loop_body
      %s18 = ssub.s32 %s13, 1
      %s19 = ssub.s32 %s13, 2
      %s20 = sadd.s32 %s13, 1
      %s21 = ssub.s32 %s13, %s20
      %p22 = scmp.eq.s32.totalorder %s21, 0
      %s24 = sadd.s32 %s23, 1
      %s25 = scalar_select %p22, %s23, %s24
      %p28 = pneg %p22
      %p29 = scmp.eq.s32.totalorder %s13, 1
      %p30 = por %p28, %p29
      %p31 = scmp.ne.s32.totalorder %s23, %s26
      %p32 = scmp.eq.s32.totalorder %s13, 0
      %p33 = por %p31, %p32
      %p34 = scmp.ne.s32.totalorder %s23, %s26
      %p35 = scmp.eq.s32.totalorder %s18, 1
      %p36 = por %p34, %p35
      %p37 = scmp.ne.s32.totalorder %s26, %s27
      %p38 = scmp.eq.s32.totalorder %s18, 0
      %p39 = por %p37, %p38
      %p40 = scmp.ne.s32.totalorder %s26, %s27
      %p41 = scmp.eq.s32.totalorder %s19, 1
      %p42 = por %p40, %p41
      %p44 = scmp.ne.s32.totalorder %s27, %s43
      %p45 = scmp.eq.s32.totalorder %s19, 0
      %p46 = por %p44, %p45
      %s47 = ssub.s32 %s13, %s20
      %p48 = scmp.eq.s32.totalorder %s47, 0
      %s50 = sadd.s32 %s49, 1
      %s51 = scalar_select %p48, %s49, %s50
      %p54 = pneg %p48
      %p55 = scmp.eq.s32.totalorder %s13, 1
      %p56 = por %p54, %p55
      %p57 = scmp.ne.s32.totalorder %s49, %s52
      %p58 = scmp.eq.s32.totalorder %s13, 0
      %p59 = por %p57, %p58
      %p60 = scmp.ne.s32.totalorder %s49, %s52
      %p61 = scmp.eq.s32.totalorder %s18, 1
      %p62 = por %p60, %p61
      %p63 = scmp.ne.s32.totalorder %s52, %s53
      %p64 = scmp.eq.s32.totalorder %s18, 0
      %p65 = por %p63, %p64
      %p66 = scmp.ne.s32.totalorder %s52, %s53
      %p67 = scmp.eq.s32.totalorder %s19, 1
      %p68 = por %p66, %p67
      %p70 = scmp.ne.s32.totalorder %s53, %s69
      %p71 = scmp.eq.s32.totalorder %s19, 0
      %p72 = por %p70, %p71
      %p73 = scmp.le.s32.totalorder 1, %s13
      %p74 = scmp.lt.s32.totalorder %s13, 3
      %p75 = pnand %p73, %p74
      %p76 = pneg %p75
      // Predicated region
      $region9: #{tpu_custom_call.1} parent=5 // pred_check
        _
      $region10: #{tpu_custom_call.1} parent=5 // pred_check_branch
        %78 = sbr.rel (%p75) target = $region12
      $region11: #{tpu_custom_call.1} parent=5 // pred_region
        %s79 = ssub.s32 %s13, 1
      $region12: #{tpu_custom_call.1} parent=5 // pred_fallthru
        _
      %p80 = scmp.lt.s32.totalorder %s13, 2
      // Predicated region
      $region13: #{tpu_custom_call.1} parent=5 // pred_check
        %p81 = pneg %p80
      $region14: #{tpu_custom_call.1} parent=5 // pred_check_branch
        %83 = sbr.rel (%p81) target = $region16
      $region15: #{tpu_custom_call.1} parent=5 // pred_region
        // Predicated region
        $region17: #{tpu_custom_call.1} parent=15 // pred_check
          %p84 = pneg %p33
        $region18: #{tpu_custom_call.1} parent=15 // pred_check_branch
          %86 = sbr.rel (%p84) target = $region20
        $region19: #{tpu_custom_call.1} parent=15 // pred_region
          %s87 = sand.u32 %s23, 1
          %s88 = scalar_lea.sflag [#allocation5], %s87
          %s89 = sand.u32 %s23, 1
          %s90 = smul.addr %s89, 16
          %s91 = scalar_lea.vmem [#allocation4], %s90
          %s93 = ssub.s32 256, 256
          %94 = vsyncadd %s88, %s93
          %s95 = smul.addr %s13, 2
          %s96 = smul.addr %s95, 128
          %s97 = scalar_lea.hbm %s0, %s96
          %s98 = sshll.u32 %s91, 4
          %s99 = int_to_ptr.vmem [resolvable:$true] %s98
          %104 = dma.hbm_to_vmem [thread:$0]  %s97, 256, %s99, %s88, 128, 128, 8
        $region20: #{tpu_custom_call.1} parent=15 // pred_fallthru
          _
      $region16: #{tpu_custom_call.1} parent=5 // pred_fallthru
        _
      %p105 = scmp.le.s32.totalorder 1, %s13
      %p106 = scmp.lt.s32.totalorder %s13, 3
      %p107 = pnand %p105, %p106
      %p108 = pneg %p107
      // Predicated region
      $region21: #{tpu_custom_call.1} parent=5 // pred_check
        _
      $region22: #{tpu_custom_call.1} parent=5 // pred_check_branch
        %110 = sbr.rel (%p107) target = $region24
      $region23: #{tpu_custom_call.1} parent=5 // pred_region
        %s111 = ssub.s32 %s13, 1
        %s112 = sand.u32 %s26, 1
        %s113 = scalar_lea.sflag [#allocation5], %s112
        %s114 = sand.u32 %s26, 1
        %s115 = smul.addr %s114, 16
        %s116 = scalar_lea.vmem [#allocation4], %s115
        // Predicated region
        $region25: #{tpu_custom_call.1} parent=23 // pred_check
          %p117 = pneg %p39
        $region26: #{tpu_custom_call.1} parent=23 // pred_check_branch
          %119 = sbr.rel (%p117) target = $region28
        $region27: #{tpu_custom_call.1} parent=23 // pred_region
          %120 = dma.done %s113, 256
        $region28: #{tpu_custom_call.1} parent=23 // pred_fallthru
          _
        %s121 = sand.u32 %s26, 1
        %s122 = scalar_lea.sflag [#allocation5], %s121
        %s123 = sand.u32 %s26, 1
        %s124 = smul.addr %s123, 16
        %s125 = scalar_lea.vmem [#allocation4], %s124
        %p126 = pneg %p39
        %p127 = pneg %p36
        %p128 = pneg %p65
        %p129 = pneg %p62
        %s130 = sand.u32 %s52, 1
        %s131 = scalar_lea.sflag [#allocation6], %s130
        %s132 = sand.u32 %s52, 1
        %s133 = smul.addr %s132, 8
        %s134 = scalar_lea.vmem [#allocation7], %s133
        %v135 = vld [vmem:[%s116] sm:$0xff]
        %v136 = vld [vmem:[%s116 + $0x8] sm:$0xff]
        %vm137 = vcmask 261120
        %v139 = vsel %vm137, %v135, 0
        %v142 = vsel %vm137, %v136, 0
        %144 = vmatprep.subr.mxu0 0.0
        %v145 = vand.u32 %v139, 4294901760
        %146 = vmatpush1.xpose.msra.mxu0 %v145
        %147 = vmatprep.subr.mxu0 0.0
        %v148 = vand.u32 %v142, 4294901760
        %149 = vmatpush1.xpose.msra.mxu0 %v148
        %150 = vmatprep.subr.mxu0 0.0
        %151 = vmatpush1.xpose.msra.mxu0 0.0
        %152 = vmatprep.subr.mxu0 0.0
        %153 = vmatpush1.xpose.msra.mxu0 0.0
        %154 = vmatprep.subr.mxu0 0.0
        %155 = vmatpush1.xpose.msra.mxu0 0.0
        %156 = vmatprep.subr.mxu0 0.0
        %157 = vmatpush1.xpose.msra.mxu0 0.0
        %158 = vmatprep.subr.mxu0 0.0
        %159 = vmatpush1.xpose.msra.mxu0 0.0
        %160 = vmatprep.subr.mxu0 0.0
        %161 = vmatpush1.xpose.msra.mxu0 0.0
        %162 = vmatprep.subr.mxu0 0.0
        %163 = vmatpush1.xpose.msra.mxu0 0.0
        %164 = vmatprep.subr.mxu0 0.0
        %165 = vmatpush1.xpose.msra.mxu0 0.0
        %166 = vmatprep.subr.mxu0 0.0
        %167 = vmatpush1.xpose.msra.mxu0 0.0
        %168 = vmatprep.subr.mxu0 0.0
        %169 = vmatpush1.xpose.msra.mxu0 0.0
        %170 = vmatprep.subr.mxu0 0.0
        %171 = vmatpush1.xpose.msra.mxu0 0.0
        %172 = vmatprep.subr.mxu0 0.0
        %173 = vmatpush1.xpose.msra.mxu0 0.0
        %174 = vmatprep.subr.mxu0 0.0
        %175 = vmatpush1.xpose.msra.mxu0 0.0
        %176 = vmatprep.subr.mxu0 0.0
        %177 = vmatpush1.xpose.msra.mxu0 0.0
        %178 = vmatprep.subr.mxu0 0.0
        %179 = vmatpush1.xpose.msra.mxu0 0.0
        %180 = vmatprep.subr.mxu0 0.0
        %181 = vmatpush1.xpose.msra.mxu0 0.0
        %182 = vmatprep.subr.mxu0 0.0
        %183 = vmatpush1.xpose.msra.mxu0 0.0
        %184 = vmatprep.subr.mxu0 0.0
        %185 = vmatpush1.xpose.msra.mxu0 0.0
        %186 = vmatprep.subr.mxu0 0.0
        %187 = vmatpush1.xpose.msra.mxu0 0.0
        %188 = vmatprep.subr.mxu0 0.0
        %189 = vmatpush1.xpose.msra.mxu0 0.0
        %190 = vmatprep.subr.mxu0 0.0
        %191 = vmatpush1.xpose.msra.mxu0 0.0
        %192 = vmatprep.subr.mxu0 0.0
        %193 = vmatpush1.xpose.msra.mxu0 0.0
        %194 = vmatprep.subr.mxu0 0.0
        %195 = vmatpush1.xpose.msra.mxu0 0.0
        %196 = vmatprep.subr.mxu0 0.0
        %197 = vmatpush1.xpose.msra.mxu0 0.0
        %198 = vmatprep.subr.mxu0 0.0
        %199 = vmatpush1.xpose.msra.mxu0 0.0
        %200 = vmatprep.subr.mxu0 0.0
        %201 = vmatpush1.xpose.msra.mxu0 0.0
        %202 = vmatprep.subr.mxu0 0.0
        %203 = vmatpush1.xpose.msra.mxu0 0.0
        %204 = vmatprep.subr.mxu0 0.0
        %205 = vmatpush1.xpose.msra.mxu0 0.0
        %206 = vmatprep.subr.mxu0 0.0
        %207 = vmatpush1.xpose.msra.mxu0 0.0
        %208 = vmatprep.subr.mxu0 0.0
        %209 = vmatpush1.xpose.msra.mxu0 0.0
        %210 = vmatprep.mubr.f32.mxu0 0.0
        %v211 = vand.u32 %v139, 4294901760
        %v212 = vsub.f32 %v139, %v211
        %v213 = vand.u32 %v212, 4294901760
        %v214 = vsub.f32 %v212, %v213
        %v215 = vand.u32 %v214, 4294901760
        %216 = vmatmul.mubr.f32.gmra.mrb[0].mxu0 %v215
        %v217 = vpop.f32.mrb[0].mxu0
        %v218 = vadd.f32 0.0, %v217
        %v219 = vpop.f32.mrb[0].mxu0
        %220 = vmatprep.mubr.f32.mxu0 0.0
        %v221 = vand.u32 %v142, 4294901760
        %v222 = vsub.f32 %v142, %v221
        %v223 = vand.u32 %v222, 4294901760
        %v224 = vsub.f32 %v222, %v223
        %v225 = vand.u32 %v224, 4294901760
        %226 = vmatmul.mubr.f32.gmra.mrb[0].mxu0 %v225
        %v227 = vpop.f32.mrb[0].mxu0
        %v228 = vadd.f32 0.0, %v227
        %v229 = vpop.f32.mrb[0].mxu0
        %230 = vdwg.mxu0
        %231 = vmatprep.subr.mxu0 0.0
        %v232 = vand.u32 %v139, 4294901760
        %v233 = vsub.f32 %v139, %v232
        %v234 = vand.u32 %v233, 4294901760
        %v235 = vsub.f32 %v233, %v234
        %v236 = vand.u32 %v235, 4294901760
        %237 = vmatpush1.xpose.msra.mxu0 %v236
        %238 = vmatprep.subr.mxu0 0.0
        %v239 = vand.u32 %v142, 4294901760
        %v240 = vsub.f32 %v142, %v239
        %v241 = vand.u32 %v240, 4294901760
        %v242 = vsub.f32 %v240, %v241
        %v243 = vand.u32 %v242, 4294901760
        %244 = vmatpush1.xpose.msra.mxu0 %v243
        %245 = vmatprep.subr.mxu0 0.0
        %246 = vmatpush1.xpose.msra.mxu0 0.0
        %247 = vmatprep.subr.mxu0 0.0
        %248 = vmatpush1.xpose.msra.mxu0 0.0
        %249 = vmatprep.subr.mxu0 0.0
        %250 = vmatpush1.xpose.msra.mxu0 0.0
        %251 = vmatprep.subr.mxu0 0.0
        %252 = vmatpush1.xpose.msra.mxu0 0.0
        %253 = vmatprep.subr.mxu0 0.0
        %254 = vmatpush1.xpose.msra.mxu0 0.0
        %255 = vmatprep.subr.mxu0 0.0
        %256 = vmatpush1.xpose.msra.mxu0 0.0
        %257 = vmatprep.subr.mxu0 0.0
        %258 = vmatpush1.xpose.msra.mxu0 0.0
        %259 = vmatprep.subr.mxu0 0.0
        %260 = vmatpush1.xpose.msra.mxu0 0.0
        %261 = vmatprep.subr.mxu0 0.0
        %262 = vmatpush1.xpose.msra.mxu0 0.0
        %263 = vmatprep.subr.mxu0 0.0
        %264 = vmatpush1.xpose.msra.mxu0 0.0
        %265 = vmatprep.subr.mxu0 0.0
        %266 = vmatpush1.xpose.msra.mxu0 0.0
        %267 = vmatprep.subr.mxu0 0.0
        %268 = vmatpush1.xpose.msra.mxu0 0.0
        %269 = vmatprep.subr.mxu0 0.0
        %270 = vmatpush1.xpose.msra.mxu0 0.0
        %271 = vmatprep.subr.mxu0 0.0
        %272 = vmatpush1.xpose.msra.mxu0 0.0
        %273 = vmatprep.subr.mxu0 0.0
        %274 = vmatpush1.xpose.msra.mxu0 0.0
        %275 = vmatprep.subr.mxu0 0.0
        %276 = vmatpush1.xpose.msra.mxu0 0.0
        %277 = vmatprep.subr.mxu0 0.0
        %278 = vmatpush1.xpose.msra.mxu0 0.0
        %279 = vmatprep.subr.mxu0 0.0
        %280 = vmatpush1.xpose.msra.mxu0 0.0
        %281 = vmatprep.subr.mxu0 0.0
        %282 = vmatpush1.xpose.msra.mxu0 0.0
        %283 = vmatprep.subr.mxu0 0.0
        %284 = vmatpush1.xpose.msra.mxu0 0.0
        %285 = vmatprep.subr.mxu0 0.0
        %286 = vmatpush1.xpose.msra.mxu0 0.0
        %287 = vmatprep.subr.mxu0 0.0
        %288 = vmatpush1.xpose.msra.mxu0 0.0
        %289 = vmatprep.subr.mxu0 0.0
        %290 = vmatpush1.xpose.msra.mxu0 0.0
        %291 = vmatprep.subr.mxu0 0.0
        %292 = vmatpush1.xpose.msra.mxu0 0.0
        %293 = vmatprep.subr.mxu0 0.0
        %294 = vmatpush1.xpose.msra.mxu0 0.0
        %295 = vmatprep.subr.mxu0 0.0
        %296 = vmatpush1.xpose.msra.mxu0 0.0
        %297 = vmatprep.subr.mxu0 0.0
        %298 = vmatpush1.xpose.msra.mxu0 0.0
        %299 = vmatprep.subr.mxu0 0.0
        %300 = vmatpush1.xpose.msra.mxu0 0.0
        %301 = vmatprep.subr.mxu0 0.0
        %302 = vmatpush1.xpose.msra.mxu0 0.0
        %303 = vmatprep.subr.mxu0 0.0
        %304 = vmatpush1.xpose.msra.mxu0 0.0
        %305 = vmatprep.mubr.f32.mxu0 0.0
        %v306 = vand.u32 %v139, 4294901760
        %307 = vmatmul.mubr.f32.gmra.mrb[0].mxu0 %v306
        %v308 = vpop.f32.mrb[0].mxu0
        %v309 = vadd.f32 %v218, %v308
        %v310 = vpop.f32.mrb[0].mxu0
        %311 = vmatprep.mubr.f32.mxu0 0.0
        %v312 = vand.u32 %v142, 4294901760
        %313 = vmatmul.mubr.f32.gmra.mrb[0].mxu0 %v312
        %v314 = vpop.f32.mrb[0].mxu0
        %v315 = vadd.f32 %v228, %v314
        %v316 = vpop.f32.mrb[0].mxu0
        %317 = vdwg.mxu0
        %318 = vmatprep.subr.mxu0 0.0
        %v319 = vand.u32 %v139, 4294901760
        %v320 = vsub.f32 %v139, %v319
        %321 = vmatpush1.xpose.msra.mxu0 %v320
        %322 = vmatprep.subr.mxu0 0.0
        %v323 = vand.u32 %v142, 4294901760
        %v324 = vsub.f32 %v142, %v323
        %325 = vmatpush1.xpose.msra.mxu0 %v324
        %326 = vmatprep.subr.mxu0 0.0
        %327 = vmatpush1.xpose.msra.mxu0 0.0
        %328 = vmatprep.subr.mxu0 0.0
        %329 = vmatpush1.xpose.msra.mxu0 0.0
        %330 = vmatprep.subr.mxu0 0.0
        %331 = vmatpush1.xpose.msra.mxu0 0.0
        %332 = vmatprep.subr.mxu0 0.0
        %333 = vmatpush1.xpose.msra.mxu0 0.0
        %334 = vmatprep.subr.mxu0 0.0
        %335 = vmatpush1.xpose.msra.mxu0 0.0
        %336 = vmatprep.subr.mxu0 0.0
        %337 = vmatpush1.xpose.msra.mxu0 0.0
        %338 = vmatprep.subr.mxu0 0.0
        %339 = vmatpush1.xpose.msra.mxu0 0.0
        %340 = vmatprep.subr.mxu0 0.0
        %341 = vmatpush1.xpose.msra.mxu0 0.0
        %342 = vmatprep.subr.mxu0 0.0
        %343 = vmatpush1.xpose.msra.mxu0 0.0
        %344 = vmatprep.subr.mxu0 0.0
        %345 = vmatpush1.xpose.msra.mxu0 0.0
        %346 = vmatprep.subr.mxu0 0.0
        %347 = vmatpush1.xpose.msra.mxu0 0.0
        %348 = vmatprep.subr.mxu0 0.0
        %349 = vmatpush1.xpose.msra.mxu0 0.0
        %350 = vmatprep.subr.mxu0 0.0
        %351 = vmatpush1.xpose.msra.mxu0 0.0
        %352 = vmatprep.subr.mxu0 0.0
        %353 = vmatpush1.xpose.msra.mxu0 0.0
        %354 = vmatprep.subr.mxu0 0.0
        %355 = vmatpush1.xpose.msra.mxu0 0.0
        %356 = vmatprep.subr.mxu0 0.0
        %357 = vmatpush1.xpose.msra.mxu0 0.0
        %358 = vmatprep.subr.mxu0 0.0
        %359 = vmatpush1.xpose.msra.mxu0 0.0
        %360 = vmatprep.subr.mxu0 0.0
        %361 = vmatpush1.xpose.msra.mxu0 0.0
        %362 = vmatprep.subr.mxu0 0.0
        %363 = vmatpush1.xpose.msra.mxu0 0.0
        %364 = vmatprep.subr.mxu0 0.0
        %365 = vmatpush1.xpose.msra.mxu0 0.0
        %366 = vmatprep.subr.mxu0 0.0
        %367 = vmatpush1.xpose.msra.mxu0 0.0
        %368 = vmatprep.subr.mxu0 0.0
        %369 = vmatpush1.xpose.msra.mxu0 0.0
        %370 = vmatprep.subr.mxu0 0.0
        %371 = vmatpush1.xpose.msra.mxu0 0.0
        %372 = vmatprep.subr.mxu0 0.0
        %373 = vmatpush1.xpose.msra.mxu0 0.0
        %374 = vmatprep.subr.mxu0 0.0
        %375 = vmatpush1.xpose.msra.mxu0 0.0
        %376 = vmatprep.subr.mxu0 0.0
        %377 = vmatpush1.xpose.msra.mxu0 0.0
        %378 = vmatprep.subr.mxu0 0.0
        %379 = vmatpush1.xpose.msra.mxu0 0.0
        %380 = vmatprep.subr.mxu0 0.0
        %381 = vmatpush1.xpose.msra.mxu0 0.0
        %382 = vmatprep.subr.mxu0 0.0
        %383 = vmatpush1.xpose.msra.mxu0 0.0
        %384 = vmatprep.subr.mxu0 0.0
        %385 = vmatpush1.xpose.msra.mxu0 0.0
        %386 = vmatprep.mubr.f32.mxu0 0.0
        %v387 = vand.u32 %v139, 4294901760
        %v388 = vsub.f32 %v139, %v387
        %389 = vmatmul.mubr.f32.gmra.mrb[0].mxu0 %v388
        %v390 = vpop.f32.mrb[0].mxu0
        %v391 = vadd.f32 %v309, %v390
        %v392 = vpop.f32.mrb[0].mxu0
        %393 = vmatprep.mubr.f32.mxu0 0.0
        %v394 = vand.u32 %v142, 4294901760
        %v395 = vsub.f32 %v142, %v394
        %396 = vmatmul.mubr.f32.gmra.mrb[0].mxu0 %v395
        %v397 = vpop.f32.mrb[0].mxu0
        %v398 = vadd.f32 %v315, %v397
        %v399 = vpop.f32.mrb[0].mxu0
        %400 = vdwg.mxu0
        %401 = vmatprep.subr.mxu0 0.0
        %v402 = vand.u32 %v139, 4294901760
        %403 = vmatpush1.xpose.msra.mxu0 %v402
        %404 = vmatprep.subr.mxu0 0.0
        %v405 = vand.u32 %v142, 4294901760
        %406 = vmatpush1.xpose.msra.mxu0 %v405
        %407 = vmatprep.subr.mxu0 0.0
        %408 = vmatpush1.xpose.msra.mxu0 0.0
        %409 = vmatprep.subr.mxu0 0.0
        %410 = vmatpush1.xpose.msra.mxu0 0.0
        %411 = vmatprep.subr.mxu0 0.0
        %412 = vmatpush1.xpose.msra.mxu0 0.0
        %413 = vmatprep.subr.mxu0 0.0
        %414 = vmatpush1.xpose.msra.mxu0 0.0
        %415 = vmatprep.subr.mxu0 0.0
        %416 = vmatpush1.xpose.msra.mxu0 0.0
        %417 = vmatprep.subr.mxu0 0.0
        %418 = vmatpush1.xpose.msra.mxu0 0.0
        %419 = vmatprep.subr.mxu0 0.0
        %420 = vmatpush1.xpose.msra.mxu0 0.0
        %421 = vmatprep.subr.mxu0 0.0
        %422 = vmatpush1.xpose.msra.mxu0 0.0
        %423 = vmatprep.subr.mxu0 0.0
        %424 = vmatpush1.xpose.msra.mxu0 0.0
        %425 = vmatprep.subr.mxu0 0.0
        %426 = vmatpush1.xpose.msra.mxu0 0.0
        %427 = vmatprep.subr.mxu0 0.0
        %428 = vmatpush1.xpose.msra.mxu0 0.0
        %429 = vmatprep.subr.mxu0 0.0
        %430 = vmatpush1.xpose.msra.mxu0 0.0
        %431 = vmatprep.subr.mxu0 0.0
        %432 = vmatpush1.xpose.msra.mxu0 0.0
        %433 = vmatprep.subr.mxu0 0.0
        %434 = vmatpush1.xpose.msra.mxu0 0.0
        %435 = vmatprep.subr.mxu0 0.0
        %436 = vmatpush1.xpose.msra.mxu0 0.0
        %437 = vmatprep.subr.mxu0 0.0
        %438 = vmatpush1.xpose.msra.mxu0 0.0
        %439 = vmatprep.subr.mxu0 0.0
        %440 = vmatpush1.xpose.msra.mxu0 0.0
        %441 = vmatprep.subr.mxu0 0.0
        %442 = vmatpush1.xpose.msra.mxu0 0.0
        %443 = vmatprep.subr.mxu0 0.0
        %444 = vmatpush1.xpose.msra.mxu0 0.0
        %445 = vmatprep.subr.mxu0 0.0
        %446 = vmatpush1.xpose.msra.mxu0 0.0
        %447 = vmatprep.subr.mxu0 0.0
        %448 = vmatpush1.xpose.msra.mxu0 0.0
        %449 = vmatprep.subr.mxu0 0.0
        %450 = vmatpush1.xpose.msra.mxu0 0.0
        %451 = vmatprep.subr.mxu0 0.0
        %452 = vmatpush1.xpose.msra.mxu0 0.0
        %453 = vmatprep.subr.mxu0 0.0
        %454 = vmatpush1.xpose.msra.mxu0 0.0
        %455 = vmatprep.subr.mxu0 0.0
        %456 = vmatpush1.xpose.msra.mxu0 0.0
        %457 = vmatprep.subr.mxu0 0.0
        %458 = vmatpush1.xpose.msra.mxu0 0.0
        %459 = vmatprep.subr.mxu0 0.0
        %460 = vmatpush1.xpose.msra.mxu0 0.0
        %461 = vmatprep.subr.mxu0 0.0
        %462 = vmatpush1.xpose.msra.mxu0 0.0
        %463 = vmatprep.subr.mxu0 0.0
        %464 = vmatpush1.xpose.msra.mxu0 0.0
        %465 = vmatprep.subr.mxu0 0.0
        %466 = vmatpush1.xpose.msra.mxu0 0.0
        %467 = vmatprep.mubr.f32.mxu0 0.0
        %v468 = vand.u32 %v139, 4294901760
        %v469 = vsub.f32 %v139, %v468
        %v470 = vand.u32 %v469, 4294901760
        %471 = vmatmul.mubr.f32.gmra.mrb[0].mxu0 %v470
        %v472 = vpop.f32.mrb[0].mxu0
        %v473 = vadd.f32 %v391, %v472
        %v474 = vpop.f32.mrb[0].mxu0
        %475 = vmatprep.mubr.f32.mxu0 0.0
        %v476 = vand.u32 %v142, 4294901760
        %v477 = vsub.f32 %v142, %v476
        %v478 = vand.u32 %v477, 4294901760
        %479 = vmatmul.mubr.f32.gmra.mrb[0].mxu0 %v478
        %v480 = vpop.f32.mrb[0].mxu0
        %v481 = vadd.f32 %v398, %v480
        %v482 = vpop.f32.mrb[0].mxu0
        %483 = vdwg.mxu0
        %484 = vmatprep.subr.mxu0 0.0
        %v485 = vand.u32 %v139, 4294901760
        %v486 = vsub.f32 %v139, %v485
        %v487 = vand.u32 %v486, 4294901760
        %488 = vmatpush1.xpose.msra.mxu0 %v487
        %489 = vmatprep.subr.mxu0 0.0
        %v490 = vand.u32 %v142, 4294901760
        %v491 = vsub.f32 %v142, %v490
        %v492 = vand.u32 %v491, 4294901760
        %493 = vmatpush1.xpose.msra.mxu0 %v492
        %494 = vmatprep.subr.mxu0 0.0
        %495 = vmatpush1.xpose.msra.mxu0 0.0
        %496 = vmatprep.subr.mxu0 0.0
        %497 = vmatpush1.xpose.msra.mxu0 0.0
        %498 = vmatprep.subr.mxu0 0.0
        %499 = vmatpush1.xpose.msra.mxu0 0.0
        %500 = vmatprep.subr.mxu0 0.0
        %501 = vmatpush1.xpose.msra.mxu0 0.0
        %502 = vmatprep.subr.mxu0 0.0
        %503 = vmatpush1.xpose.msra.mxu0 0.0
        %504 = vmatprep.subr.mxu0 0.0
        %505 = vmatpush1.xpose.msra.mxu0 0.0
        %506 = vmatprep.subr.mxu0 0.0
        %507 = vmatpush1.xpose.msra.mxu0 0.0
        %508 = vmatprep.subr.mxu0 0.0
        %509 = vmatpush1.xpose.msra.mxu0 0.0
        %510 = vmatprep.subr.mxu0 0.0
        %511 = vmatpush1.xpose.msra.mxu0 0.0
        %512 = vmatprep.subr.mxu0 0.0
        %513 = vmatpush1.xpose.msra.mxu0 0.0
        %514 = vmatprep.subr.mxu0 0.0
        %515 = vmatpush1.xpose.msra.mxu0 0.0
        %516 = vmatprep.subr.mxu0 0.0
        %517 = vmatpush1.xpose.msra.mxu0 0.0
        %518 = vmatprep.subr.mxu0 0.0
        %519 = vmatpush1.xpose.msra.mxu0 0.0
        %520 = vmatprep.subr.mxu0 0.0
        %521 = vmatpush1.xpose.msra.mxu0 0.0
        %522 = vmatprep.subr.mxu0 0.0
        %523 = vmatpush1.xpose.msra.mxu0 0.0
        %524 = vmatprep.subr.mxu0 0.0
        %525 = vmatpush1.xpose.msra.mxu0 0.0
        %526 = vmatprep.subr.mxu0 0.0
        %527 = vmatpush1.xpose.msra.mxu0 0.0
        %528 = vmatprep.subr.mxu0 0.0
        %529 = vmatpush1.xpose.msra.mxu0 0.0
        %530 = vmatprep.subr.mxu0 0.0
        %531 = vmatpush1.xpose.msra.mxu0 0.0
        %532 = vmatprep.subr.mxu0 0.0
        %533 = vmatpush1.xpose.msra.mxu0 0.0
        %534 = vmatprep.subr.mxu0 0.0
        %535 = vmatpush1.xpose.msra.mxu0 0.0
        %536 = vmatprep.subr.mxu0 0.0
        %537 = vmatpush1.xpose.msra.mxu0 0.0
        %538 = vmatprep.subr.mxu0 0.0
        %539 = vmatpush1.xpose.msra.mxu0 0.0
        %540 = vmatprep.subr.mxu0 0.0
        %541 = vmatpush1.xpose.msra.mxu0 0.0
        %542 = vmatprep.subr.mxu0 0.0
        %543 = vmatpush1.xpose.msra.mxu0 0.0
        %544 = vmatprep.subr.mxu0 0.0
        %545 = vmatpush1.xpose.msra.mxu0 0.0
        %546 = vmatprep.subr.mxu0 0.0
        %547 = vmatpush1.xpose.msra.mxu0 0.0
        %548 = vmatprep.subr.mxu0 0.0
        %549 = vmatpush1.xpose.msra.mxu0 0.0
        %550 = vmatprep.subr.mxu0 0.0
        %551 = vmatpush1.xpose.msra.mxu0 0.0
        %552 = vmatprep.subr.mxu0 0.0
        %553 = vmatpush1.xpose.msra.mxu0 0.0
        %554 = vmatprep.mubr.f32.mxu0 0.0
        %v555 = vand.u32 %v139, 4294901760
        %556 = vmatmul.mubr.f32.gmra.mrb[0].mxu0 %v555
        %v557 = vpop.f32.mrb[0].mxu0
        %v558 = vadd.f32 %v473, %v557
        %v559 = vpop.f32.mrb[0].mxu0
        %560 = vmatprep.mubr.f32.mxu0 0.0
        %v561 = vand.u32 %v142, 4294901760
        %562 = vmatmul.mubr.f32.gmra.mrb[0].mxu0 %v561
        %v563 = vpop.f32.mrb[0].mxu0
        %v564 = vadd.f32 %v481, %v563
        %v565 = vpop.f32.mrb[0].mxu0
        %566 = vdwg.mxu0
        %567 = vmatprep.subr.mxu0 0.0
        %v568 = vand.u32 %v139, 4294901760
        %569 = vmatpush1.xpose.msra.mxu0 %v568
        %570 = vmatprep.subr.mxu0 0.0
        %v571 = vand.u32 %v142, 4294901760
        %572 = vmatpush1.xpose.msra.mxu0 %v571
        %573 = vmatprep.subr.mxu0 0.0
        %574 = vmatpush1.xpose.msra.mxu0 0.0
        %575 = vmatprep.subr.mxu0 0.0
        %576 = vmatpush1.xpose.msra.mxu0 0.0
        %577 = vmatprep.subr.mxu0 0.0
        %578 = vmatpush1.xpose.msra.mxu0 0.0
        %579 = vmatprep.subr.mxu0 0.0
        %580 = vmatpush1.xpose.msra.mxu0 0.0
        %581 = vmatprep.subr.mxu0 0.0
        %582 = vmatpush1.xpose.msra.mxu0 0.0
        %583 = vmatprep.subr.mxu0 0.0
        %584 = vmatpush1.xpose.msra.mxu0 0.0
        %585 = vmatprep.subr.mxu0 0.0
        %586 = vmatpush1.xpose.msra.mxu0 0.0
        %587 = vmatprep.subr.mxu0 0.0
        %588 = vmatpush1.xpose.msra.mxu0 0.0
        %589 = vmatprep.subr.mxu0 0.0
        %590 = vmatpush1.xpose.msra.mxu0 0.0
        %591 = vmatprep.subr.mxu0 0.0
        %592 = vmatpush1.xpose.msra.mxu0 0.0
        %593 = vmatprep.subr.mxu0 0.0
        %594 = vmatpush1.xpose.msra.mxu0 0.0
        %595 = vmatprep.subr.mxu0 0.0
        %596 = vmatpush1.xpose.msra.mxu0 0.0
        %597 = vmatprep.subr.mxu0 0.0
        %598 = vmatpush1.xpose.msra.mxu0 0.0
        %599 = vmatprep.subr.mxu0 0.0
        %600 = vmatpush1.xpose.msra.mxu0 0.0
        %601 = vmatprep.subr.mxu0 0.0
        %602 = vmatpush1.xpose.msra.mxu0 0.0
        %603 = vmatprep.subr.mxu0 0.0
        %604 = vmatpush1.xpose.msra.mxu0 0.0
        %605 = vmatprep.subr.mxu0 0.0
        %606 = vmatpush1.xpose.msra.mxu0 0.0
        %607 = vmatprep.subr.mxu0 0.0
        %608 = vmatpush1.xpose.msra.mxu0 0.0
        %609 = vmatprep.subr.mxu0 0.0
        %610 = vmatpush1.xpose.msra.mxu0 0.0
        %611 = vmatprep.subr.mxu0 0.0
        %612 = vmatpush1.xpose.msra.mxu0 0.0
        %613 = vmatprep.subr.mxu0 0.0
        %614 = vmatpush1.xpose.msra.mxu0 0.0
        %615 = vmatprep.subr.mxu0 0.0
        %616 = vmatpush1.xpose.msra.mxu0 0.0
        %617 = vmatprep.subr.mxu0 0.0
        %618 = vmatpush1.xpose.msra.mxu0 0.0
        %619 = vmatprep.subr.mxu0 0.0
        %620 = vmatpush1.xpose.msra.mxu0 0.0
        %621 = vmatprep.subr.mxu0 0.0
        %622 = vmatpush1.xpose.msra.mxu0 0.0
        %623 = vmatprep.subr.mxu0 0.0
        %624 = vmatpush1.xpose.msra.mxu0 0.0
        %625 = vmatprep.subr.mxu0 0.0
        %626 = vmatpush1.xpose.msra.mxu0 0.0
        %627 = vmatprep.subr.mxu0 0.0
        %628 = vmatpush1.xpose.msra.mxu0 0.0
        %629 = vmatprep.subr.mxu0 0.0
        %630 = vmatpush1.xpose.msra.mxu0 0.0
        %631 = vmatprep.subr.mxu0 0.0
        %632 = vmatpush1.xpose.msra.mxu0 0.0
        %633 = vmatprep.mubr.f32.mxu0 0.0
        %v634 = vand.u32 %v139, 4294901760
        %635 = vmatmul.mubr.f32.gmra.mrb[0].mxu0 %v634
        %v636 = vpop.f32.mrb[0].mxu0
        %v637 = vadd.f32 %v558, %v636
        %v638 = vpop.f32.mrb[0].mxu0
        %639 = vmatprep.mubr.f32.mxu0 0.0
        %v640 = vand.u32 %v142, 4294901760
        %641 = vmatmul.mubr.f32.gmra.mrb[0].mxu0 %v640
        %v642 = vpop.f32.mrb[0].mxu0
        %v643 = vadd.f32 %v564, %v642
        %v644 = vpop.f32.mrb[0].mxu0
        %645 = vdwg.mxu0
        %vm646 = vcmask 57344
        %647 = vst.msk [vmem:[#allocation2] sm:$0x1] %vm646, %v637
        %vm648 = vcmask 7168
        %649 = vst.msk [vmem:[#allocation3] sm:$0xff] %vm648, %v637
        %651 = vrot.lane.b32.xlu0 %v637, 8
        %v652 = vpop.permute.xlu0 %651
        %vm654 = vcmask 123969
        %655 = vst.msk [vmem:[#allocation2 - $0x1] sm:$0x2] %vm654, %v652
        %656 = vrot.lane.b32.xlu0 %v637, 127
        %v657 = vpop.permute.xlu0 %656
        %659 = vst.msk [vmem:[#allocation3 + $0x8] sm:$0xff] %vm648, %v657
        %660 = vrot.lane.b32.xlu0 %v637, 16
        %v661 = vpop.permute.xlu0 %660
        %vm663 = vcmask 190594
        %664 = vst.msk [vmem:[#allocation2 - $0x2] sm:$0x4] %vm663, %v661
        %665 = vrot.lane.b32.xlu0 %v637, 126
        %v666 = vpop.permute.xlu0 %665
        %668 = vst.msk [vmem:[#allocation3 + $0x10] sm:$0xff] %vm648, %v666
        %669 = vrot.lane.b32.xlu0 %v637, 24
        %v670 = vpop.permute.xlu0 %669
        %vm672 = vcmask 257219
        %673 = vst.msk [vmem:[#allocation2 - $0x3] sm:$0x8] %vm672, %v670
        %674 = vrot.lane.b32.xlu0 %v637, 125
        %v675 = vpop.permute.xlu0 %674
        %677 = vst.msk [vmem:[#allocation3 + $0x18] sm:$0xff] %vm648, %v675
        %678 = vrot.lane.b32.xlu0 %v637, 32
        %v679 = vpop.permute.xlu0 %678
        %vm681 = vcmask 323844
        %682 = vst.msk [vmem:[#allocation2 - $0x4] sm:$0x10] %vm681, %v679
        %683 = vrot.lane.b32.xlu0 %v637, 124
        %v684 = vpop.permute.xlu0 %683
        %686 = vst.msk [vmem:[#allocation3 + $0x20] sm:$0xff] %vm648, %v684
        %687 = vrot.lane.b32.xlu0 %v637, 40
        %v688 = vpop.permute.xlu0 %687
        %vm690 = vcmask 390469
        %691 = vst.msk [vmem:[#allocation2 - $0x5] sm:$0x20] %vm690, %v688
        %692 = vrot.lane.b32.xlu0 %v637, 123
        %v693 = vpop.permute.xlu0 %692
        %695 = vst.msk [vmem:[#allocation3 + $0x28] sm:$0xff] %vm648, %v693
        %696 = vrot.lane.b32.xlu0 %v637, 48
        %v697 = vpop.permute.xlu0 %696
        %vm699 = vcmask 457094
        %700 = vst.msk [vmem:[#allocation2 - $0x6] sm:$0x40] %vm699, %v697
        %701 = vrot.lane.b32.xlu0 %v637, 122
        %v702 = vpop.permute.xlu0 %701
        %704 = vst.msk [vmem:[#allocation3 + $0x30] sm:$0xff] %vm648, %v702
        %705 = vrot.lane.b32.xlu0 %v637, 56
        %v706 = vpop.permute.xlu0 %705
        %vm708 = vcmask 523719
        %709 = vst.msk [vmem:[#allocation2 - $0x7] sm:$0x80] %vm708, %v706
        %710 = vrot.lane.b32.xlu0 %v637, 121
        %v711 = vpop.permute.xlu0 %710
        %713 = vst.msk [vmem:[#allocation3 + $0x38] sm:$0xff] %vm648, %v711
        %715 = vrot.lane.b32.xlu0 %v643, 120
        %v716 = vpop.permute.xlu0 %715
        %718 = vst.msk [vmem:[#allocation2 + $0x1] sm:$0x1] %vm646, %v716
        %719 = vrot.lane.b32.xlu0 %v643, 121
        %v720 = vpop.permute.xlu0 %719
        %vm722 = vcmask 15368
        %723 = vst.msk [vmem:[#allocation3] sm:$0xff] %vm722, %v720
        %724 = vst.msk [vmem:[#allocation2] sm:$0x2] %vm654, %v643
        %725 = vst.msk [vmem:[#allocation3 + $0x8] sm:$0xff] %vm722, %v716
        %726 = vrot.lane.b32.xlu0 %v643, 8
        %v727 = vpop.permute.xlu0 %726
        %729 = vst.msk [vmem:[#allocation2 - $0x1] sm:$0x4] %vm663, %v727
        %730 = vrot.lane.b32.xlu0 %v643, 119
        %v731 = vpop.permute.xlu0 %730
        %733 = vst.msk [vmem:[#allocation3 + $0x10] sm:$0xff] %vm722, %v731
        %734 = vrot.lane.b32.xlu0 %v643, 16
        %v735 = vpop.permute.xlu0 %734
        %737 = vst.msk [vmem:[#allocation2 - $0x2] sm:$0x8] %vm672, %v735
        %738 = vrot.lane.b32.xlu0 %v643, 118
        %v739 = vpop.permute.xlu0 %738
        %741 = vst.msk [vmem:[#allocation3 + $0x18] sm:$0xff] %vm722, %v739
        %742 = vrot.lane.b32.xlu0 %v643, 24
        %v743 = vpop.permute.xlu0 %742
        %745 = vst.msk [vmem:[#allocation2 - $0x3] sm:$0x10] %vm681, %v743
        %746 = vrot.lane.b32.xlu0 %v643, 117
        %v747 = vpop.permute.xlu0 %746
        %749 = vst.msk [vmem:[#allocation3 + $0x20] sm:$0xff] %vm722, %v747
        %750 = vrot.lane.b32.xlu0 %v643, 32
        %v751 = vpop.permute.xlu0 %750
        %753 = vst.msk [vmem:[#allocation2 - $0x4] sm:$0x20] %vm690, %v751
        %754 = vrot.lane.b32.xlu0 %v643, 116
        %v755 = vpop.permute.xlu0 %754
        %757 = vst.msk [vmem:[#allocation3 + $0x28] sm:$0xff] %vm722, %v755
        %758 = vrot.lane.b32.xlu0 %v643, 40
        %v759 = vpop.permute.xlu0 %758
        %761 = vst.msk [vmem:[#allocation2 - $0x5] sm:$0x40] %vm699, %v759
        %762 = vrot.lane.b32.xlu0 %v643, 115
        %v763 = vpop.permute.xlu0 %762
        %765 = vst.msk [vmem:[#allocation3 + $0x30] sm:$0xff] %vm722, %v763
        %766 = vrot.lane.b32.xlu0 %v643, 48
        %v767 = vpop.permute.xlu0 %766
        %769 = vst.msk [vmem:[#allocation2 - $0x6] sm:$0x80] %vm708, %v767
        %770 = vrot.lane.b32.xlu0 %v643, 114
        %v771 = vpop.permute.xlu0 %770
        %773 = vst.msk [vmem:[#allocation3 + $0x38] sm:$0xff] %vm722, %v771
        %v774 = vld [vmem:[#allocation2] sm:$0x1]
        %v775 = vld [vmem:[#allocation3] sm:$0xff]
        %v776 = vld [vmem:[#allocation3 + $0x8] sm:$0xff]
        %v777 = vld [vmem:[#allocation3 + $0x10] sm:$0xff]
        %v778 = vld [vmem:[#allocation3 + $0x18] sm:$0xff]
        %v779 = vld [vmem:[#allocation3 + $0x20] sm:$0xff]
        %v780 = vld [vmem:[#allocation3 + $0x28] sm:$0xff]
        %v781 = vld [vmem:[#allocation3 + $0x30] sm:$0xff]
        %v782 = vld [vmem:[#allocation3 + $0x38] sm:$0xff]
        %784 = vset.pattern.permute.xlu0 0
        %785 = vperm.xlu0 %784, %v775
        %v786 = vpop.permute.xlu0 %785
        %789 = vset.pattern.permute.xlu0 0
        %790 = vperm.xlu0 %789, %v776
        %v791 = vpop.permute.xlu0 %790
        %794 = vset.pattern.permute.xlu0 0
        %795 = vperm.xlu0 %794, %v777
        %v796 = vpop.permute.xlu0 %795
        %799 = vset.pattern.permute.xlu0 0
        %800 = vperm.xlu0 %799, %v778
        %v801 = vpop.permute.xlu0 %800
        %804 = vset.pattern.permute.xlu0 0
        %805 = vperm.xlu0 %804, %v779
        %v806 = vpop.permute.xlu0 %805
        %809 = vset.pattern.permute.xlu0 0
        %810 = vperm.xlu0 %809, %v780
        %v811 = vpop.permute.xlu0 %810
        %814 = vset.pattern.permute.xlu0 0
        %815 = vperm.xlu0 %814, %v781
        %v816 = vpop.permute.xlu0 %815
        %819 = vset.pattern.permute.xlu0 0
        %820 = vperm.xlu0 %819, %v782
        %v821 = vpop.permute.xlu0 %820
        %v823 = vlaneseq
        %v824 = vshrl.u32 %v823, 7
        %v825 = vsub.s32 0, %v824
        %v826 = vrot.slane %v774, %v825
        %vm827 = vcmp.gt.f32.partialorder %v786, %v826
        %vm828 = vcmp.gt.f32.partialorder %v791, %v826
        %vm829 = vcmp.gt.f32.partialorder %v796, %v826
        %vm830 = vcmp.gt.f32.partialorder %v801, %v826
        %vm831 = vcmp.gt.f32.partialorder %v806, %v826
        %vm832 = vcmp.gt.f32.partialorder %v811, %v826
        %vm833 = vcmp.gt.f32.partialorder %v816, %v826
        %vm834 = vcmp.gt.f32.partialorder %v821, %v826
        %v835 = vsel %vm827, 1, 0
        %v836 = vsel %vm828, 1, 0
        %v837 = vsel %vm829, 1, 0
        %v838 = vsel %vm830, 1, 0
        %v839 = vsel %vm831, 1, 0
        %v840 = vsel %vm832, 1, 0
        %v841 = vsel %vm833, 1, 0
        %v842 = vsel %vm834, 1, 0
        %v843 = vcvt.s32.f32 %v835
        %v844 = vcvt.s32.f32 %v836
        %v845 = vcvt.s32.f32 %v837
        %v846 = vcvt.s32.f32 %v838
        %v847 = vcvt.s32.f32 %v839
        %v848 = vcvt.s32.f32 %v840
        %v849 = vcvt.s32.f32 %v841
        %v850 = vcvt.s32.f32 %v842
        %vm851 = vcmask 523264
        %v852 = vsel %vm851, %v843, 0.0
        %v853 = vsel %vm851, %v844, 0.0
        %v854 = vadd.f32 %v852, %v853
        %v855 = vsel %vm851, %v845, 0.0
        %v856 = vadd.f32 %v854, %v855
        %v857 = vsel %vm851, %v846, 0.0
        %v858 = vadd.f32 %v856, %v857
        %v859 = vsel %vm851, %v847, 0.0
        %v860 = vadd.f32 %v858, %v859
        %v861 = vsel %vm851, %v848, 0.0
        %v862 = vadd.f32 %v860, %v861
        %v863 = vsel %vm851, %v849, 0.0
        %v864 = vadd.f32 %v862, %v863
        %v865 = vsel %vm851, %v850, 0.0
        %v866 = vadd.f32 %v864, %v865
        %v867 = vrot.slane %v866, 4
        %v868 = vadd.f32 %v866, %v867
        %v869 = vrot.slane %v868, 2
        %v870 = vadd.f32 %v868, %v869
        %v871 = vrot.slane %v870, 1
        %v872 = vadd.f32 %v870, %v871
        %vm873 = vcmp.lt.f32.partialorder %v872, 16.0
        %v874 = vsel %vm873, %v774, 0.0
        %v875 = vld [vmem:[#allocation2 + $0x1] sm:$0x1]
        %876 = vset.pattern.permute.xlu0 1
        %877 = vperm.xlu0 %876, %v775
        %v878 = vpop.permute.xlu0 %877
        %880 = vset.pattern.permute.xlu0 1
        %881 = vperm.xlu0 %880, %v776
        %v882 = vpop.permute.xlu0 %881
        %884 = vset.pattern.permute.xlu0 1
        %885 = vperm.xlu0 %884, %v777
        %v886 = vpop.permute.xlu0 %885
        %888 = vset.pattern.permute.xlu0 1
        %889 = vperm.xlu0 %888, %v778
        %v890 = vpop.permute.xlu0 %889
        %892 = vset.pattern.permute.xlu0 1
        %893 = vperm.xlu0 %892, %v779
        %v894 = vpop.permute.xlu0 %893
        %896 = vset.pattern.permute.xlu0 1
        %897 = vperm.xlu0 %896, %v780
        %v898 = vpop.permute.xlu0 %897
        %900 = vset.pattern.permute.xlu0 1
        %901 = vperm.xlu0 %900, %v781
        %v902 = vpop.permute.xlu0 %901
        %904 = vset.pattern.permute.xlu0 1
        %905 = vperm.xlu0 %904, %v782
        %v906 = vpop.permute.xlu0 %905
        %v908 = vlaneseq
        %v909 = vshrl.u32 %v908, 7
        %v910 = vsub.s32 0, %v909
        %v911 = vrot.slane %v875, %v910
        %vm912 = vcmp.gt.f32.partialorder %v878, %v911
        %vm913 = vcmp.gt.f32.partialorder %v882, %v911
        %vm914 = vcmp.gt.f32.partialorder %v886, %v911
        %vm915 = vcmp.gt.f32.partialorder %v890, %v911
        %vm916 = vcmp.gt.f32.partialorder %v894, %v911
        %vm917 = vcmp.gt.f32.partialorder %v898, %v911
        %vm918 = vcmp.gt.f32.partialorder %v902, %v911
        %vm919 = vcmp.gt.f32.partialorder %v906, %v911
        %v920 = vsel %vm912, 1, 0
        %v921 = vsel %vm913, 1, 0
        %v922 = vsel %vm914, 1, 0
        %v923 = vsel %vm915, 1, 0
        %v924 = vsel %vm916, 1, 0
        %v925 = vsel %vm917, 1, 0
        %v926 = vsel %vm918, 1, 0
        %v927 = vsel %vm919, 1, 0
        %v928 = vcvt.s32.f32 %v920
        %v929 = vcvt.s32.f32 %v921
        %v930 = vcvt.s32.f32 %v922
        %v931 = vcvt.s32.f32 %v923
        %v932 = vcvt.s32.f32 %v924
        %v933 = vcvt.s32.f32 %v925
        %v934 = vcvt.s32.f32 %v926
        %v935 = vcvt.s32.f32 %v927
        %v936 = vsel %vm851, %v928, 0.0
        %v937 = vsel %vm851, %v929, 0.0
        %v938 = vadd.f32 %v936, %v937
        %v939 = vsel %vm851, %v930, 0.0
        %v940 = vadd.f32 %v938, %v939
        %v941 = vsel %vm851, %v931, 0.0
        %v942 = vadd.f32 %v940, %v941
        %v943 = vsel %vm851, %v932, 0.0
        %v944 = vadd.f32 %v942, %v943
        %v945 = vsel %vm851, %v933, 0.0
        %v946 = vadd.f32 %v944, %v945
        %v947 = vsel %vm851, %v934, 0.0
        %v948 = vadd.f32 %v946, %v947
        %v949 = vsel %vm851, %v935, 0.0
        %v950 = vadd.f32 %v948, %v949
        %v951 = vrot.slane %v950, 4
        %v952 = vadd.f32 %v950, %v951
        %v953 = vrot.slane %v952, 2
        %v954 = vadd.f32 %v952, %v953
        %v955 = vrot.slane %v954, 1
        %v956 = vadd.f32 %v954, %v955
        %vm957 = vcmp.lt.f32.partialorder %v956, 16.0
        %v958 = vsel %vm957, %v875, 0.0
        %v959 = vsub.f32 %v874, %v958
        %v960 = vmul.f32 %v959, %v959
        %vm961 = vcmask 516096
        %v962 = vsel %vm961, %v960, 0.0
        %963 = vadd.xlane.f32.xlu0 %v962
        %v964 = vpop.xlane.xlu0 %963
        %v965 = vrcp.pop 64.0
        %v966 = vmul.f32 %v964, %v965
        %v967 = vlaneseq
        %v968 = vshrl.u32 %v967, 7
        %v969 = vsub.s32 0, %v968
        %v970 = vrot.slane %v966, %v969
        %971 = vst [vmem:[%s134] sm:$0xff] %v970
        %s972 = sand.u32 %s52, 1
        %s973 = scalar_lea.sflag [#allocation6], %s972
        %s974 = sand.u32 %s52, 1
        %s975 = smul.addr %s974, 8
        %s976 = scalar_lea.vmem [#allocation7], %s975
        // Predicated region
        $region29: #{tpu_custom_call.1} parent=23 // pred_check
          %p977 = pneg %p62
        $region30: #{tpu_custom_call.1} parent=23 // pred_check_branch
          %979 = sbr.rel (%p977) target = $region32
        $region31: #{tpu_custom_call.1} parent=23 // pred_region
          %s981 = ssub.s32 128, 128
          %982 = vsyncadd %s973, %s981
          %s983 = smul.addr %s18, 128
          %s984 = scalar_lea.hbm %s1, %s983
          %s986 = sshll.u32 %s976, 4
          %s987 = int_to_ptr.vmem [resolvable:$true] %s986
          %989 = dma.vmem_to_hbm [thread:$0]  %s987, 128, %s984, %s973
        $region32: #{tpu_custom_call.1} parent=23 // pred_fallthru
          _
      $region24: #{tpu_custom_call.1} parent=5 // pred_fallthru
        _
      %p990 = scmp.le.s32.totalorder 2, %s13
      // Predicated region
      $region33: #{tpu_custom_call.1} parent=5 // pred_check
        %p991 = pneg %p990
      $region34: #{tpu_custom_call.1} parent=5 // pred_check_branch
        %993 = sbr.rel (%p991) target = $region36
      $region35: #{tpu_custom_call.1} parent=5 // pred_region
        %s994 = ssub.s32 %s13, 2
        // Predicated region
        $region37: #{tpu_custom_call.1} parent=35 // pred_check
          %p995 = pneg %p68
        $region38: #{tpu_custom_call.1} parent=35 // pred_check_branch
          %997 = sbr.rel (%p995) target = $region40
        $region39: #{tpu_custom_call.1} parent=35 // pred_region
          %s998 = sand.u32 %s53, 1
          %s999 = scalar_lea.sflag [#allocation6], %s998
          %s1000 = sand.u32 %s53, 1
          %s1001 = smul.addr %s1000, 8
          %s1002 = scalar_lea.vmem [#allocation7], %s1001
          %1003 = dma.done %s999, 128
        $region40: #{tpu_custom_call.1} parent=35 // pred_fallthru
          _
      $region36: #{tpu_custom_call.1} parent=5 // pred_fallthru
        _
    $region6: #{tpu_custom_call.1} parent=1 // loop_footer
      %s17 = sadd.s32 1, %s13
    $region7: #{tpu_custom_call.1} parent=1 // loop_footer_branch
      %12 = sbr.rel target = $region3
    $region8: #{tpu_custom_call.1} parent=1 // loop_exit
      _
    %1004 = vsyncpa [#allocation5], 1
    %s1005 = scalar_lea.sflag [#allocation5], 1
    %1006 = vsyncpa %s1005, 1
    %1007 = vsyncpa [#allocation6], 1
    %s1008 = scalar_lea.sflag [#allocation6], 1
    %1009 = vsyncpa %s1008, 1

</llo_original>
